<compile_context>
chip_gen: v7x
topology: tpu7x:2x2x1
jax: 0.10.0
libtpu: 0.0.40
codegen_flags: <defaults>
</compile_context>

<pallas_src>
import functools

import jax
import jax.numpy as jnp
from jax.experimental import pallas as pl
from jax.experimental.pallas import tpu as pltpu


def _cdiv(a, b):
    return (a + b - 1) // b


def _round_up(x, m):
    return _cdiv(x, m) * m


def mlp_kernel(xt_ref, w1t_ref, b1_ref, w2t_ref, b2_ref, o_ref):
    """Batch-in-lanes MLP tile.

    xt_ref : (F, TB)   input tile, batch along lanes (streamed per grid step)
    w1t_ref: (HP, F)   W1^T, hidden rows zero-padded to a sublane multiple (resident)
    b1_ref : (HP, 1)   hidden bias column, f32 (resident)
    w2t_ref: (O, HP)   W2^T (resident)
    b2_ref : (O, 1)    output bias column, f32 (resident)
    o_ref  : (O, TB)   lane-dense output tile
    """
    # hidden^T = relu(W1^T @ x^T + b1); f32 accumulation on the MXU,
    # bias-add / ReLU epilogue in f32 on the VPU.
    h = jnp.dot(w1t_ref[...], xt_ref[...], preferred_element_type=jnp.float32)
    h = jnp.maximum(h + b1_ref[...], 0.0)                       # (HP, TB)
    # predict^T = W2^T @ hidden^T + b2; output is (O, TB) with TB lanes, so the
    # store below is a lane-dense (unmasked for TB % 128 == 0) vst.
    y = jnp.dot(w2t_ref[...], h.astype(w2t_ref.dtype),
                preferred_element_type=jnp.float32)
    o_ref[...] = (y + b2_ref[...]).astype(o_ref.dtype)


def prepare_params(w1, b1, w2, b2, *, compute_dtype=jnp.bfloat16):
    """Repack Net parameters once, outside the per-call hot path.

    w1: (F, H)  b1: (1, H) or (H,)   [(in, out) layout, i.e. torch weight.T]
    w2: (H, O)  b2: (1, O) or (O,)
    Returns (W1^T padded, b1 column, W2^T padded, b2 column).
    Zero padding of the hidden dim is mathematically inert: padded hidden
    units are relu(0 + 0) = 0 and the corresponding W2^T columns are 0.
    """
    F, H = w1.shape
    O = w2.shape[1]
    HP = _round_up(max(H, 8), 8)   # sublane-align only; no 128/256 MXU padding
    w1t = jnp.zeros((HP, F), compute_dtype).at[:H, :].set(w1.T.astype(compute_dtype))
    b1c = jnp.zeros((HP, 1), jnp.float32).at[:H, 0].set(
        jnp.reshape(b1, (H,)).astype(jnp.float32))
    w2t = jnp.zeros((O, HP), compute_dtype).at[:, :H].set(w2.T.astype(compute_dtype))
    b2c = jnp.reshape(b2, (O, 1)).astype(jnp.float32)
    return w1t, b1c, w2t, b2c


def _choose_tile_b(B, tile_b):
    """Batch-lane tile width: multiple of 128 (unmasked stores), <= B, and
    giving >= 2 grid steps when B allows so both v7x TensorCores get work."""
    if B <= 128:
        return B               # single (partial-lane) block; tiny batches are overhead-bound anyway
    if B < 256:
        return 128             # grid of 2 ragged blocks
    half = _round_up(_cdiv(B, 2), 128)          # cap: at least 2 grid steps
    return max(128, min(_round_up(tile_b, 128), half))


@functools.partial(jax.jit, static_argnames=("tile_b",))
def net_forward(x, params, *, tile_b=2048):
    """Forward pass of Net: relu(x @ W1 + b1) @ W2 + b2.

    x: (B, F) float; params from prepare_params().  Returns (B, O) float32.
    """
    w1t, b1c, w2t, b2c = params
    B, F = x.shape
    HP = w1t.shape[0]
    O = w2t.shape[0]

    # Feature-major dataflow: batch lands in lanes for both the x read and the
    # output write (single cast+transpose pass in XLA; kernel I/O is then
    # ~O(bytes-of-math) instead of a padded 128-wide f32 output slab).
    xt = x.T.astype(w1t.dtype)                                  # (F, B)

    tb = _choose_tile_b(B, tile_b)
    grid = (_cdiv(B, tb),)   # ragged last block handled by Pallas; no batch-pad copy

    out_t = pl.pallas_call(
        mlp_kernel,
        out_shape=jax.ShapeDtypeStruct((O, B), jnp.float32),
        grid=grid,
        in_specs=[
            pl.BlockSpec((F, tb), lambda i: (0, i)),    # x^T: streamed batch tiles
            pl.BlockSpec((HP, F), lambda i: (0, 0)),    # W1^T: VMEM-resident
            pl.BlockSpec((HP, 1), lambda i: (0, 0)),    # b1:   VMEM-resident
            pl.BlockSpec((O, HP), lambda i: (0, 0)),    # W2^T: VMEM-resident
            pl.BlockSpec((O, 1), lambda i: (0, 0)),     # b2:   VMEM-resident
        ],
        out_specs=pl.BlockSpec((O, tb), lambda i: (0, i)),
        compiler_params=pltpu.CompilerParams(
            dimension_semantics=("parallel",),          # batch axis: shard across TCs (v7x)
            vmem_limit_bytes=32 * 1024 * 1024,          # far above need on v5e/v6e/v7x
        ),
    )(xt, w1t, b1c, w2t, b2c)

    return out_t.T                                      # (B, O); free reshape when O == 1


def init_params(key, n_feature, n_hidden, n_output):
    """Deterministic init mimicking torch.nn.Linear default:
    U(-1/sqrt(fan_in), 1/sqrt(fan_in)) for weight and bias, stored in
    (in, out) layout (transpose of PyTorch's (out, in))."""
    k1, k2, k3, k4 = jax.random.split(key, 4)
    bound1 = 1.0 / jnp.sqrt(n_feature)
    bound2 = 1.0 / jnp.sqrt(n_hidden)
    w1 = jax.random.uniform(k1, (n_feature, n_hidden), jnp.float32, -bound1, bound1)
    b1 = jax.random.uniform(k2, (1, n_hidden), jnp.float32, -bound1, bound1)
    w2 = jax.random.uniform(k3, (n_hidden, n_output), jnp.float32, -bound2, bound2)
    b2 = jax.random.uniform(k4, (1, n_output), jnp.float32, -bound2, bound2)
    return w1, b1, w2, b2


if __name__ == "__main__":
    # Shapes consistent with the regression exercise: Net(4, 32, 1).
    batch, n_feature, n_hidden, n_output = 8, 4, 32, 1

    key = jax.random.PRNGKey(0)
    kx, kp = jax.random.split(key)
    x = jax.random.normal(kx, (batch, n_feature), jnp.float32)
    w1, b1, w2, b2 = init_params(kp, n_feature, n_hidden, n_output)

    ref = jnp.maximum(x @ w1 + b1, 0.0) @ w2 + b2

    # Exact-path check: f32 compute must match the reference tightly.
    params_f32 = prepare_params(w1, b1, w2, b2, compute_dtype=jnp.float32)
    out_f32 = net_forward(x, params_f32)
    jax.block_until_ready(out_f32)
    assert out_f32.shape == (batch, n_output)
    assert jnp.allclose(out_f32, ref, atol=1e-5, rtol=1e-5)

    # Default fast path: bf16 inputs/weights, f32 accumulation & epilogue.
    params_bf16 = prepare_params(w1, b1, w2, b2)
    out_bf16 = net_forward(x, params_bf16)
    jax.block_until_ready(out_bf16)
    assert out_bf16.shape == (batch, n_output)
    assert jnp.allclose(out_bf16, ref, atol=1e-1, rtol=1e-1)  # bf16-level tolerance

    # Larger, non-multiple batch exercises the ragged last block and the
    # >=2-grid-step path (both v7x TensorCores get work).
    b_big = 1037
    x_big = jax.random.normal(jax.random.PRNGKey(1), (b_big, n_feature), jnp.float32)
    ref_big = jnp.maximum(x_big @ w1 + b1, 0.0) @ w2 + b2

    out_big_f32 = net_forward(x_big, params_f32, tile_b=2048)
    jax.block_until_ready(out_big_f32)
    assert out_big_f32.shape == (b_big, n_output)
    assert jnp.allclose(out_big_f32, ref_big, atol=1e-4, rtol=1e-4)

    out_big_bf16 = net_forward(x_big, params_bf16, tile_b=2048)
    jax.block_until_ready(out_big_bf16)
    assert jnp.allclose(out_big_bf16, ref_big, atol=1e-1, rtol=1e-1)

    print("KERNEL_OK")
</pallas_src>

<mosaic_0001>
module attributes {stable_mosaic.version = 11 : i64} {
  func.func @mlp_kernel(%arg0: i32, %arg1: memref<4x8xf32, #tpu.memory_space<vmem>>, %arg2: memref<32x4xf32, #tpu.memory_space<vmem>>, %arg3: memref<32x1xf32, #tpu.memory_space<vmem>>, %arg4: memref<1x32xf32, #tpu.memory_space<vmem>>, %arg5: memref<1x1xf32, #tpu.memory_space<vmem>>, %arg6: memref<1x8xf32, #tpu.memory_space<vmem>>) attributes {dimension_semantics = [#tpu.dimension_semantics<parallel>], iteration_bounds = array<i64: 1>, scalar_prefetch = 0 : i64, scratch_operands = 0 : i64, tpu.core_type = #tpu.core_type<tc>, window_params = [{transform_indices = @transform_0, window_bounds = array<i64: 4, 8>}, {pipeline_mode = #tpu.pipeline_mode<synchronous>, transform_indices = @transform_1, window_bounds = array<i64: 32, 4>}, {pipeline_mode = #tpu.pipeline_mode<synchronous>, transform_indices = @transform_2, window_bounds = array<i64: 32, 1>}, {pipeline_mode = #tpu.pipeline_mode<synchronous>, transform_indices = @transform_3, window_bounds = array<i64: 1, 32>}, {pipeline_mode = #tpu.pipeline_mode<synchronous>, transform_indices = @transform_4, window_bounds = array<i64: 1, 1>}, {transform_indices = @transform_5, window_bounds = array<i64: 1, 8>}]} {
    %c0 = arith.constant 0 : index
    %c0_0 = arith.constant 0 : index
    %0 = vector.load %arg2[%c0, %c0_0] : memref<32x4xf32, #tpu.memory_space<vmem>>, vector<32x4xf32>
    %c0_1 = arith.constant 0 : index
    %c0_2 = arith.constant 0 : index
    %1 = vector.load %arg1[%c0_1, %c0_2] : memref<4x8xf32, #tpu.memory_space<vmem>>, vector<4x8xf32>
    %cst = arith.constant dense<0.000000e+00> : vector<32x8xf32>
    %2 = tpu.matmul %0, %1, %cst {dimension_numbers = #tpu.dot_dimension_numbers<[1], [0], [0], [1], [0, 0, 1, 1], [], []>} : vector<32x4xf32>, vector<4x8xf32>, vector<32x8xf32> -> vector<32x8xf32>
    %c0_3 = arith.constant 0 : index
    %c0_4 = arith.constant 0 : index
    %3 = vector.load %arg3[%c0_3, %c0_4] : memref<32x1xf32, #tpu.memory_space<vmem>>, vector<32x1xf32>
    %4 = vector.broadcast %3 : vector<32x1xf32> to vector<32x8xf32>
    %5 = arith.addf %2, %4 : vector<32x8xf32>
    %cst_5 = arith.constant 0.000000e+00 : f32
    %6 = vector.broadcast %cst_5 : f32 to vector<32x8xf32>
    %7 = arith.maximumf %5, %6 : vector<32x8xf32>
    %c0_6 = arith.constant 0 : index
    %c0_7 = arith.constant 0 : index
    %8 = vector.load %arg4[%c0_6, %c0_7] : memref<1x32xf32, #tpu.memory_space<vmem>>, vector<1x32xf32>
    %cst_8 = arith.constant dense<0.000000e+00> : vector<1x8xf32>
    %9 = tpu.matmul %8, %7, %cst_8 {dimension_numbers = #tpu.dot_dimension_numbers<[1], [0], [0], [1], [0, 0, 1, 1], [], []>} : vector<1x32xf32>, vector<32x8xf32>, vector<1x8xf32> -> vector<1x8xf32>
    %c0_9 = arith.constant 0 : index
    %c0_10 = arith.constant 0 : index
    %10 = vector.load %arg5[%c0_9, %c0_10] : memref<1x1xf32, #tpu.memory_space<vmem>>, vector<1x1xf32>
    %11 = vector.broadcast %10 : vector<1x1xf32> to vector<1x8xf32>
    %12 = arith.addf %9, %11 : vector<1x8xf32>
    %c0_11 = arith.constant 0 : index
    %c0_12 = arith.constant 0 : index
    %13 = vector.load %arg6[%c0_11, %c0_12] : memref<1x8xf32, #tpu.memory_space<vmem>>, vector<1x8xf32>
    tpu.vector_store %arg6[%c0_11, %c0_12], %12 {strides = array<i32>} : memref<1x8xf32, #tpu.memory_space<vmem>>, vector<1x8xf32>,
    return
  }
  func.func @transform_0(%arg0: i32) -> (i32, i32) {
    %c0_i32 = arith.constant 0 : i32
    %c0_i32_0 = arith.constant 0 : i32
    return %c0_i32, %arg0 : i32, i32
  }
  func.func @transform_1(%arg0: i32) -> (i32, i32) {
    %c0_i32 = arith.constant 0 : i32
    %c0_i32_0 = arith.constant 0 : i32
    %c0_i32_1 = arith.constant 0 : i32
    return %c0_i32, %c0_i32_0 : i32, i32
  }
  func.func @transform_2(%arg0: i32) -> (i32, i32) {
    %c0_i32 = arith.constant 0 : i32
    %c0_i32_0 = arith.constant 0 : i32
    %c0_i32_1 = arith.constant 0 : i32
    return %c0_i32, %c0_i32_0 : i32, i32
  }
  func.func @transform_3(%arg0: i32) -> (i32, i32) {
    %c0_i32 = arith.constant 0 : i32
    %c0_i32_0 = arith.constant 0 : i32
    %c0_i32_1 = arith.constant 0 : i32
    return %c0_i32, %c0_i32_0 : i32, i32
  }
  func.func @transform_4(%arg0: i32) -> (i32, i32) {
    %c0_i32 = arith.constant 0 : i32
    %c0_i32_0 = arith.constant 0 : i32
    %c0_i32_1 = arith.constant 0 : i32
    return %c0_i32, %c0_i32_0 : i32, i32
  }
  func.func @transform_5(%arg0: i32) -> (i32, i32) {
    %c0_i32 = arith.constant 0 : i32
    %c0_i32_0 = arith.constant 0 : i32
    return %c0_i32, %arg0 : i32, i32
  }
}

</mosaic_0001>

<llo_original>
// kernel: net_forward.1
$region0: #{net_forward.1}
  #allocation0 [shape = 'u32[]', space=smem, size = 0x4, offset = 0x4, fixed_abs, tag = 'smem constant byte address 0x4 - core index']
  #allocation1 [shape = 'u32[144,128]{1,0:T(1,128)}', space=vmem, size = 0x12000, scoped, tag = 'internal scratch']
  #allocation2 [shape = 'f32[1,1]{1,0:T(1,128)S(1)}', space=vmem, size = 0x200, scoped, tag = 'scoped memory for net_forward.1']
  %s0 = inlined_call_operand.vmem [shape: f32[4,8], index: 0, kind: input, shape index: {}]
  %s1 = inlined_call_operand.vmem [shape: f32[32,4], index: 1, kind: input, shape index: {}]
  %s2 = inlined_call_operand.vmem [shape: f32[32,1], index: 2, kind: input, shape index: {}]
  %s3 = inlined_call_operand.vmem [shape: f32[1,32], index: 3, kind: input, shape index: {}]
  %s4 = inlined_call_operand.<no memory space> [shape: f32[1,1], index: 4, kind: input, shape index: {}]
  %s5 = inlined_call_operand.hbm [shape: f32[1,8], index: 5, kind: output, shape index: {}]
  %s6 = sld [smem:[#allocation0]]
  $region30: #{net_forward.1} parent=0
    _
  %s8 = ssub.s32 1, %s6
  %s9 = scalar_select 0, %s8, %s6
  %v10 = vstv %s4
  %11 = vst [vmem:[#allocation2] sm:$0x1] %v10
  $region1: #{net_forward.1} parent=0
    #allocation3 [shape = 'u8[512]{0}', space=vmem, size = 0x400, scoped, tag = 'output window, operand 0, single buffered']
    #allocation4 [shape = 's32[1]{0}', space=sflag, size = 0x4, scoped, tag = 'scoped memory for net_forward.1']
    %12 = vsyncpa [#allocation4], 0
    // Predicated region
    $region2: #{net_forward.1} parent=1 // pred_check
      _
    $region3: #{net_forward.1} parent=1 // pred_check_branch
      %14 = sbr.rel (0) target = $region5
    $region4: #{net_forward.1} parent=1 // pred_region
      _
    $region5: #{net_forward.1} parent=1 // pred_fallthru
      _
    // Predicated region
    $region6: #{net_forward.1} parent=1 // pred_check
      _
    $region7: #{net_forward.1} parent=1 // pred_check_branch
      %16 = sbr.rel (0) target = $region9
    $region8: #{net_forward.1} parent=1 // pred_region
      _
    $region9: #{net_forward.1} parent=1 // pred_fallthru
      _
    // Predicated region
    $region10: #{net_forward.1} parent=1 // pred_check
      _
    $region11: #{net_forward.1} parent=1 // pred_check_branch
      %18 = sbr.rel (0) target = $region13
    $region12: #{net_forward.1} parent=1 // pred_region
      _
    $region13: #{net_forward.1} parent=1 // pred_fallthru
      _
    // Predicated region
    $region14: #{net_forward.1} parent=1 // pred_check
      _
    $region15: #{net_forward.1} parent=1 // pred_check_branch
      %20 = sbr.rel (0) target = $region17
    $region16: #{net_forward.1} parent=1 // pred_region
      _
    $region17: #{net_forward.1} parent=1 // pred_fallthru
      _
    // Predicated region
    $region18: #{net_forward.1} parent=1 // pred_check
      _
    $region19: #{net_forward.1} parent=1 // pred_check_branch
      %22 = sbr.rel (0) target = $region21
    $region20: #{net_forward.1} parent=1 // pred_region
      _
    $region21: #{net_forward.1} parent=1 // pred_fallthru
      _
    %v23 = vld [vmem:[%s1] sm:$0xff]
    %v24 = vld [vmem:[%s1 + $0x8] sm:$0xff]
    %v25 = vld [vmem:[%s1 + $0x10] sm:$0xff]
    %v26 = vld [vmem:[%s1 + $0x18] sm:$0xff]
    %v27 = vld [vmem:[%s0] sm:$0xf]
    %v28 = vld [vmem:[%s2] sm:$0xff]
    %v29 = vld [vmem:[%s2 + $0x8] sm:$0xff]
    %v30 = vld [vmem:[%s2 + $0x10] sm:$0xff]
    %v31 = vld [vmem:[%s2 + $0x18] sm:$0xff]
    %33 = vset.pattern.permute.xlu0 0
    %34 = vperm.xlu0 %33, %v28
    %v35 = vpop.permute.xlu0 %34
    %38 = vset.pattern.permute.xlu0 0
    %39 = vperm.xlu0 %38, %v29
    %v40 = vpop.permute.xlu0 %39
    %43 = vset.pattern.permute.xlu0 0
    %44 = vperm.xlu0 %43, %v30
    %v45 = vpop.permute.xlu0 %44
    %48 = vset.pattern.permute.xlu0 0
    %49 = vperm.xlu0 %48, %v31
    %v50 = vpop.permute.xlu0 %49
    %vm52 = vcmask 31744
    %v54 = vsel %vm52, %v23, 0
    %v57 = vsel %vm52, %v24, 0
    %v60 = vsel %vm52, %v25, 0
    %v63 = vsel %vm52, %v26, 0
    %vm65 = vcmask 1043456
    %v67 = vsel %vm65, %v27, 0
    %69 = vmatprep.subr.mxu0 0.0
    %70 = vmatpush1.msra.mxu0 %v67
    %71 = vmatprep.subr.mxu0 0.0
    %72 = vmatpush1.msra.mxu0 0.0
    %73 = vmatprep.subr.mxu0 0.0
    %74 = vmatpush1.msra.mxu0 0.0
    %75 = vmatprep.subr.mxu0 0.0
    %76 = vmatpush1.msra.mxu0 0.0
    %77 = vmatprep.subr.mxu0 0.0
    %78 = vmatpush1.msra.mxu0 0.0
    %79 = vmatprep.subr.mxu0 0.0
    %80 = vmatpush1.msra.mxu0 0.0
    %81 = vmatprep.subr.mxu0 0.0
    %82 = vmatpush1.msra.mxu0 0.0
    %83 = vmatprep.subr.mxu0 0.0
    %84 = vmatpush1.msra.mxu0 0.0
    %85 = vmatprep.subr.mxu0 0.0
    %86 = vmatpush1.msra.mxu0 0.0
    %87 = vmatprep.subr.mxu0 0.0
    %88 = vmatpush1.msra.mxu0 0.0
    %89 = vmatprep.subr.mxu0 0.0
    %90 = vmatpush1.msra.mxu0 0.0
    %91 = vmatprep.subr.mxu0 0.0
    %92 = vmatpush1.msra.mxu0 0.0
    %93 = vmatprep.subr.mxu0 0.0
    %94 = vmatpush1.msra.mxu0 0.0
    %95 = vmatprep.subr.mxu0 0.0
    %96 = vmatpush1.msra.mxu0 0.0
    %97 = vmatprep.subr.mxu0 0.0
    %98 = vmatpush1.msra.mxu0 0.0
    %99 = vmatprep.subr.mxu0 0.0
    %100 = vmatpush1.msra.mxu0 0.0
    %101 = vmatprep.subr.mxu0 0.0
    %102 = vmatpush1.msra.mxu0 0.0
    %103 = vmatprep.subr.mxu0 0.0
    %104 = vmatpush1.msra.mxu0 0.0
    %105 = vmatprep.subr.mxu0 0.0
    %106 = vmatpush1.msra.mxu0 0.0
    %107 = vmatprep.subr.mxu0 0.0
    %108 = vmatpush1.msra.mxu0 0.0
    %109 = vmatprep.subr.mxu0 0.0
    %110 = vmatpush1.msra.mxu0 0.0
    %111 = vmatprep.subr.mxu0 0.0
    %112 = vmatpush1.msra.mxu0 0.0
    %113 = vmatprep.subr.mxu0 0.0
    %114 = vmatpush1.msra.mxu0 0.0
    %115 = vmatprep.subr.mxu0 0.0
    %116 = vmatpush1.msra.mxu0 0.0
    %117 = vmatprep.subr.mxu0 0.0
    %118 = vmatpush1.msra.mxu0 0.0
    %119 = vmatprep.subr.mxu0 0.0
    %120 = vmatpush1.msra.mxu0 0.0
    %121 = vmatprep.subr.mxu0 0.0
    %122 = vmatpush1.msra.mxu0 0.0
    %123 = vmatprep.subr.mxu0 0.0
    %124 = vmatpush1.msra.mxu0 0.0
    %125 = vmatprep.subr.mxu0 0.0
    %126 = vmatpush1.msra.mxu0 0.0
    %127 = vmatprep.subr.mxu0 0.0
    %128 = vmatpush1.msra.mxu0 0.0
    %129 = vmatprep.subr.mxu0 0.0
    %130 = vmatpush1.msra.mxu0 0.0
    %131 = vmatprep.subr.mxu0 0.0
    %132 = vmatpush1.msra.mxu0 0.0
    %133 = vmatprep.mubr.f32.mxu0 0.0
    %134 = vmatmul.mubr.f32.gmra.mrb[0].mxu0 %v54
    %v135 = vpop.f32.mrb[0].mxu0
    %v136 = vadd.f32 %v35, %v135
    %v137 = vpop.f32.mrb[0].mxu0
    %138 = vmatprep.mubr.f32.mxu0 0.0
    %139 = vmatmul.mubr.f32.gmra.mrb[0].mxu0 %v57
    %v140 = vpop.f32.mrb[0].mxu0
    %v141 = vadd.f32 %v40, %v140
    %v142 = vpop.f32.mrb[0].mxu0
    %143 = vmatprep.mubr.f32.mxu0 0.0
    %144 = vmatmul.mubr.f32.gmra.mrb[0].mxu0 %v60
    %v145 = vpop.f32.mrb[0].mxu0
    %v146 = vadd.f32 %v45, %v145
    %v147 = vpop.f32.mrb[0].mxu0
    %148 = vmatprep.mubr.f32.mxu0 0.0
    %149 = vmatmul.mubr.f32.gmra.mrb[0].mxu0 %v63
    %v150 = vpop.f32.mrb[0].mxu0
    %v151 = vadd.f32 %v50, %v150
    %v152 = vpop.f32.mrb[0].mxu0
    %153 = vdwg.mxu0
    %v154 = vmax.f32 %v136, 0.0
    %v155 = vmax.f32 %v141, 0.0
    %v156 = vmax.f32 %v146, 0.0
    %v157 = vmax.f32 %v151, 0.0
    %v158 = vld [vmem:[%s3] sm:$0x1]
    %v159 = vld [vmem:[#allocation2] sm:$0x1]
    %161 = vset.pattern.permute.xlu0 0
    %162 = vperm.xlu0 %161, %v159
    %v163 = vpop.permute.xlu0 %162
    %v165 = vlaneseq
    %v166 = vshrl.u32 %v165, 7
    %v167 = vsub.s32 0, %v166
    %v168 = vrot.slane %v163, %v167
    %vm169 = vcmask 261120
    %v171 = vsel %vm169, %v158, 0
    %173 = vmatprep.subr.mxu0 0.0
    %174 = vmatpush1.msra.mxu0 %v154
    %175 = vmatprep.subr.mxu0 0.0
    %176 = vmatpush1.msra.mxu0 %v155
    %177 = vmatprep.subr.mxu0 0.0
    %178 = vmatpush1.msra.mxu0 %v156
    %179 = vmatprep.subr.mxu0 0.0
    %180 = vmatpush1.msra.mxu0 %v157
    %181 = vmatprep.subr.mxu0 0.0
    %182 = vmatpush1.msra.mxu0 0.0
    %183 = vmatprep.subr.mxu0 0.0
    %184 = vmatpush1.msra.mxu0 0.0
    %185 = vmatprep.subr.mxu0 0.0
    %186 = vmatpush1.msra.mxu0 0.0
    %187 = vmatprep.subr.mxu0 0.0
    %188 = vmatpush1.msra.mxu0 0.0
    %189 = vmatprep.subr.mxu0 0.0
    %190 = vmatpush1.msra.mxu0 0.0
    %191 = vmatprep.subr.mxu0 0.0
    %192 = vmatpush1.msra.mxu0 0.0
    %193 = vmatprep.subr.mxu0 0.0
    %194 = vmatpush1.msra.mxu0 0.0
    %195 = vmatprep.subr.mxu0 0.0
    %196 = vmatpush1.msra.mxu0 0.0
    %197 = vmatprep.subr.mxu0 0.0
    %198 = vmatpush1.msra.mxu0 0.0
    %199 = vmatprep.subr.mxu0 0.0
    %200 = vmatpush1.msra.mxu0 0.0
    %201 = vmatprep.subr.mxu0 0.0
    %202 = vmatpush1.msra.mxu0 0.0
    %203 = vmatprep.subr.mxu0 0.0
    %204 = vmatpush1.msra.mxu0 0.0
    %205 = vmatprep.subr.mxu0 0.0
    %206 = vmatpush1.msra.mxu0 0.0
    %207 = vmatprep.subr.mxu0 0.0
    %208 = vmatpush1.msra.mxu0 0.0
    %209 = vmatprep.subr.mxu0 0.0
    %210 = vmatpush1.msra.mxu0 0.0
    %211 = vmatprep.subr.mxu0 0.0
    %212 = vmatpush1.msra.mxu0 0.0
    %213 = vmatprep.subr.mxu0 0.0
    %214 = vmatpush1.msra.mxu0 0.0
    %215 = vmatprep.subr.mxu0 0.0
    %216 = vmatpush1.msra.mxu0 0.0
    %217 = vmatprep.subr.mxu0 0.0
    %218 = vmatpush1.msra.mxu0 0.0
    %219 = vmatprep.subr.mxu0 0.0
    %220 = vmatpush1.msra.mxu0 0.0
    %221 = vmatprep.subr.mxu0 0.0
    %222 = vmatpush1.msra.mxu0 0.0
    %223 = vmatprep.subr.mxu0 0.0
    %224 = vmatpush1.msra.mxu0 0.0
    %225 = vmatprep.subr.mxu0 0.0
    %226 = vmatpush1.msra.mxu0 0.0
    %227 = vmatprep.subr.mxu0 0.0
    %228 = vmatpush1.msra.mxu0 0.0
    %229 = vmatprep.subr.mxu0 0.0
    %230 = vmatpush1.msra.mxu0 0.0
    %231 = vmatprep.subr.mxu0 0.0
    %232 = vmatpush1.msra.mxu0 0.0
    %233 = vmatprep.subr.mxu0 0.0
    %234 = vmatpush1.msra.mxu0 0.0
    %235 = vmatprep.subr.mxu0 0.0
    %236 = vmatpush1.msra.mxu0 0.0
    %237 = vmatprep.mubr.f32.mxu0 0.0
    %238 = vmatmul.mubr.f32.gmra.mrb[0].mxu0 %v171
    %v239 = vpop.f32.mrb[0].mxu0
    %v240 = vadd.f32 %v168, %v239
    %v241 = vpop.f32.mrb[0].mxu0
    %242 = vdwg.mxu0
    %vm243 = vcmask 57344
    %244 = vst.msk [vmem:[#allocation3] sm:$0x1] %vm243, %v240
    // Predicated region
    $region22: #{net_forward.1} parent=1 // pred_check
      _
    $region23: #{net_forward.1} parent=1 // pred_check_branch
      %246 = sbr.rel (0) target = $region25
    $region24: #{net_forward.1} parent=1 // pred_region
      %s248 = ssub.s32 16, 16
      %249 = vsyncadd [#allocation4], %s248
      %s251 = sshll.u32 [#allocation3], 4
      %s252 = int_to_ptr.vmem [resolvable:$true] %s251
      %254 = dma.vmem_to_hbm [thread:$0]  %s252, 16, %s5, [#allocation4]
    $region25: #{net_forward.1} parent=1 // pred_fallthru
      _
    // Predicated region
    $region26: #{net_forward.1} parent=1 // pred_check
      _
    $region27: #{net_forward.1} parent=1 // pred_check_branch
      %256 = sbr.rel (0) target = $region29
    $region28: #{net_forward.1} parent=1 // pred_region
      %257 = dma.done [#allocation4], 16
    $region29: #{net_forward.1} parent=1 // pred_fallthru
      _
    %258 = vsyncpa [#allocation4], 1

</llo_original>
